<compile_context>
chip_gen: v6e
topology: v6e:2x2x1
jax: 0.10.0
libtpu: 0.0.40
codegen_flags: <defaults>
</compile_context>

<pallas_src>
import functools

import jax
import jax.numpy as jnp
from jax.experimental import pallas as pl
from jax.experimental.pallas import tpu as pltpu


# ---------------------------------------------------------------------------
# Kernels
# ---------------------------------------------------------------------------

def _scse_fused_kernel(x_ref, w1_ref, b1_ref, w2_ref, b2_ref, ws_ref, bs_ref,
                       o_ref):
    """Single-pass SCSE for a (NB, C, HW) block (whole images resident in VMEM).

    x_ref : (NB, C, HW)   input block
    w1_ref: (C, mid)      cSE conv1 weight (matmul form)
    b1_ref: (1, mid)      cSE conv1 bias
    w2_ref: (mid, C)      cSE conv2 weight (matmul form)
    b2_ref: (1, C)        cSE conv2 bias
    ws_ref: (C, 1)        sSE conv weight (column)
    bs_ref: (1, 1)        sSE conv bias
    o_ref : (NB, C, HW)   output block
    """
    x = x_ref[...]
    xf = x.astype(jnp.float32)                  # no-op for f32 inputs
    hw = xf.shape[2]

    # ---- cSE: global average pool + tiny MLP + sigmoid (per channel) -------
    pool = jnp.sum(xf, axis=2) * (1.0 / hw)                             # (NB, C)
    z = jnp.dot(pool, w1_ref[...], preferred_element_type=jnp.float32)  # (NB, mid)
    z = jnp.maximum(z + b1_ref[...], 0.0)
    cg = jax.nn.sigmoid(
        jnp.dot(z, w2_ref[...], preferred_element_type=jnp.float32)
        + b2_ref[...])                                                  # (NB, C)

    # ---- sSE: per-pixel gate = sigmoid(sum_c ws[c] * x[c, p] + bs) ----------
    s = jnp.sum(xf * ws_ref[...][None, :, :], axis=1, keepdims=True)    # (NB,1,HW)
    sg = jax.nn.sigmoid(s + bs_ref[...])

    # ---- fused combine: x*cSE + x*sSE == x * (cSE + sSE) --------------------
    gate = cg[:, :, None] + sg                                          # (NB,C,HW)
    o_ref[...] = (xf * gate).astype(o_ref.dtype)


def _scse_apply_kernel(x_ref, cg_ref, ws_ref, bs_ref, o_ref):
    """Two-pass fallback: apply a precomputed cSE gate + sSE gate per HW tile.

    x_ref : (1, C, THW)  input tile
    cg_ref: (1, C, 1)    precomputed per-channel cSE gate for this image (f32)
    ws_ref: (C, 1)       sSE conv weight
    bs_ref: (1, 1)       sSE conv bias
    o_ref : (1, C, THW)  output tile
    """
    xf = x_ref[0].astype(jnp.float32)                                   # (C, THW)
    s = jnp.sum(xf * ws_ref[...], axis=0, keepdims=True) + bs_ref[...]  # (1, THW)
    s_gate = jax.nn.sigmoid(s)
    gate = cg_ref[0] + s_gate                                           # (C, THW)
    o_ref[0] = (xf * gate).astype(o_ref.dtype)


# ---------------------------------------------------------------------------
# Tiling helpers
# ---------------------------------------------------------------------------

def _pick_hw_tile(hw, c, itemsize, max_block_bytes):
    """HW tile for the two-pass path: 128-aligned, bounded block bytes."""
    max_thw = max(128, ((max_block_bytes // (c * itemsize)) // 128) * 128)
    if hw <= max_thw:
        return hw                     # single full-extent block (always legal, small)
    if hw % 128 == 0:
        t = max_thw
        while hw % t != 0:            # prefer an exact divisor: no ragged tail
            t -= 128
        return t
    return max_thw                    # ragged tail handled by pl.cdiv + masking


def _pick_batch_block(n, slab_bytes, target_bytes):
    """Images per block for the fused path: ~target_bytes blocks, >=2 grid steps."""
    nb = int(max(1, min(n, target_bytes // max(slab_bytes, 1))))
    # Keep at least 2 grid steps when possible (v7x has 2 TCs; also enables
    # prefetch/compute overlap in the pipeline).
    while nb > 1 and n // nb < 2:
        nb -= 1
    while n % nb != 0:                # avoid ragged batch blocks
        nb -= 1
    return nb


# ---------------------------------------------------------------------------
# Forward
# ---------------------------------------------------------------------------

@functools.partial(jax.jit,
                   static_argnames=("fused_max_slab_bytes", "max_block_bytes"))
def scse_forward(x_nchw, params, *,
                 fused_max_slab_bytes=4 << 20,
                 max_block_bytes=4 << 20):
    """x_nchw: (N, C, H, W). params: dict of 1x1-conv weights/biases (make_params)."""
    N, C, H, W = x_nchw.shape
    HW = H * W
    x = x_nchw.reshape(N, C, HW)              # free reshape, no transpose
    itemsize = x.dtype.itemsize
    slab_bytes = C * HW * itemsize

    cost = pl.CostEstimate(flops=6 * N * C * HW,
                           transcendentals=N * (HW + C),
                           bytes_accessed=2 * N * C * HW * itemsize)
    vmem_bytes = 40 * 1024 * 1024             # < 64 MiB physical on v7x, fine elsewhere

    if slab_bytes <= fused_max_slab_bytes:
        # ---- single-pass fused path: x is read from HBM exactly once -------
        nb = _pick_batch_block(N, slab_bytes,
                               target_bytes=min(2 << 20, fused_max_slab_bytes))
        grid = (N // nb,)
        out = pl.pallas_call(
            _scse_fused_kernel,
            out_shape=jax.ShapeDtypeStruct((N, C, HW), x.dtype),
            grid_spec=pltpu.PrefetchScalarGridSpec(
                num_scalar_prefetch=0,
                grid=grid,
                in_specs=[
                    pl.BlockSpec((nb, C, HW), lambda n: (n, 0, 0)),       # x block
                    pl.BlockSpec(params["w1"].shape, lambda n: (0, 0)),   # w1
                    pl.BlockSpec(params["b1"].shape, lambda n: (0, 0)),   # b1
                    pl.BlockSpec(params["w2"].shape, lambda n: (0, 0)),   # w2
                    pl.BlockSpec(params["b2"].shape, lambda n: (0, 0)),   # b2
                    pl.BlockSpec(params["ws"].shape, lambda n: (0, 0)),   # ws
                    pl.BlockSpec(params["bs"].shape, lambda n: (0, 0)),   # bs
                ],
                out_specs=pl.BlockSpec((nb, C, HW), lambda n: (n, 0, 0)),
            ),
            compiler_params=pltpu.CompilerParams(
                dimension_semantics=("parallel",),
                vmem_limit_bytes=vmem_bytes),
            cost_estimate=cost,
        )(x, params["w1"], params["b1"], params["w2"], params["b2"],
          params["ws"], params["bs"])
        return out.reshape(N, C, H, W)

    # ---- two-pass fallback: per-image slab too large for a single VMEM block ----
    # cSE pre-pass in plain JAX, batched over N (tiny matmuls; XLA handles them).
    pool = jnp.mean(x.astype(jnp.float32), axis=2)                       # (N, C)
    z = jnp.maximum(pool @ params["w1"] + params["b1"], 0.0)            # (N, mid)
    c_gate = jax.nn.sigmoid(z @ params["w2"] + params["b2"])[:, :, None]  # (N, C, 1)

    thw = _pick_hw_tile(HW, C, itemsize, max_block_bytes)
    grid = (N, pl.cdiv(HW, thw))   # N outer, HW inner: c_gate block constant per image

    out = pl.pallas_call(
        _scse_apply_kernel,
        out_shape=jax.ShapeDtypeStruct((N, C, HW), x.dtype),
        grid_spec=pltpu.PrefetchScalarGridSpec(
            num_scalar_prefetch=0,
            grid=grid,
            in_specs=[
                pl.BlockSpec((1, C, thw), lambda n, h: (n, 0, h)),        # x tile
                pl.BlockSpec((1, C, 1), lambda n, h: (n, 0, 0)),          # c_gate
                pl.BlockSpec((C, 1), lambda n, h: (0, 0)),                # ws
                pl.BlockSpec((1, 1), lambda n, h: (0, 0)),                # bs
            ],
            out_specs=pl.BlockSpec((1, C, thw), lambda n, h: (n, 0, h)),
        ),
        compiler_params=pltpu.CompilerParams(
            dimension_semantics=("parallel", "parallel"),
            vmem_limit_bytes=vmem_bytes),
        cost_estimate=cost,
    )(x, c_gate, params["ws"], params["bs"])
    return out.reshape(N, C, H, W)


# ---------------------------------------------------------------------------
# Params + pure-JAX reference
# ---------------------------------------------------------------------------

def make_params(key, in_channels, reduction=16):
    """Deterministic synthetic params matching nn.Conv2d 1x1 shapes."""
    mid = in_channels // reduction
    k1, k2, k3, k4, k5, k6 = jax.random.split(key, 6)
    scale = 0.1
    w1 = scale * jax.random.normal(k1, (mid, in_channels), jnp.float32)   # conv1 (mid,C,1,1)
    b1 = scale * jax.random.normal(k2, (mid,), jnp.float32)
    w2 = scale * jax.random.normal(k3, (in_channels, mid), jnp.float32)   # conv2 (C,mid,1,1)
    b2 = scale * jax.random.normal(k4, (in_channels,), jnp.float32)
    ws = scale * jax.random.normal(k5, (1, in_channels), jnp.float32)     # sSE (1,C,1,1)
    bs = scale * jax.random.normal(k6, (1,), jnp.float32)
    return {
        "w1": w1.T,                        # (C, mid)
        "b1": b1.reshape(1, mid),          # (1, mid)
        "w2": w2.T,                        # (mid, C)
        "b2": b2.reshape(1, in_channels),  # (1, C)
        "ws": ws.T,                        # (C, 1)
        "bs": bs.reshape(1, 1),            # (1, 1)
    }


def scse_reference(x_nchw, params):
    """Pure-JAX reference matching PyTorch semantics."""
    x = x_nchw.astype(jnp.float32)
    pool = jnp.mean(x, axis=(2, 3))                                     # (N, C)
    z = jnp.maximum(pool @ params["w1"] + params["b1"], 0.0)            # (N, mid)
    c_gate = jax.nn.sigmoid(z @ params["w2"] + params["b2"])            # (N, C)
    c_gate = c_gate[:, :, None, None]
    xc = jnp.transpose(x, (0, 2, 3, 1))                                 # (N,H,W,C)
    s = xc @ params["ws"] + params["bs"]                                # (N,H,W,1)
    s_gate = jnp.transpose(jax.nn.sigmoid(s), (0, 3, 1, 2))             # (N,1,H,W)
    return x * c_gate + x * s_gate


if __name__ == "__main__":
    key = jax.random.PRNGKey(0)
    kx, kp = jax.random.split(key)

    # in_channels must be divisible by reduction=16 -> C=32, mid=2.
    N, C, H, W = 2, 32, 16, 16
    x = jax.random.normal(kx, (N, C, H, W), jnp.float32)
    params = make_params(kp, in_channels=C, reduction=16)
    ref = scse_reference(x, params)

    # 1) Fused single-pass path (default): grid=(N,), whole image per block.
    out = jax.block_until_ready(scse_forward(x, params))
    assert out.shape == (N, C, H, W)
    assert jnp.allclose(out, ref, atol=1e-5, rtol=1e-5), "fused path mismatch"

    # 2) Two-pass tiled path (force: disable fusion, shrink HW tiles -> grid=(2,2)).
    out2 = jax.block_until_ready(
        scse_forward(x, params, fused_max_slab_bytes=0,
                     max_block_bytes=C * 128 * 4))
    assert jnp.allclose(out2, ref, atol=1e-5, rtol=1e-5), "two-pass tiled mismatch"

    # 3) Two-pass path with HW not a multiple of 128 (ragged last block masked).
    x3 = jax.random.normal(jax.random.PRNGKey(1), (2, C, 15, 20), jnp.float32)
    ref3 = scse_reference(x3, params)
    out3 = jax.block_until_ready(
        scse_forward(x3, params, fused_max_slab_bytes=0,
                     max_block_bytes=C * 128 * 4))
    assert jnp.allclose(out3, ref3, atol=1e-5, rtol=1e-5), "ragged-HW mismatch"

    print("KERNEL_OK")
</pallas_src>

<mosaic_0001>
module attributes {stable_mosaic.version = 11 : i64} {
  func.func @_scse_fused_kernel(%arg0: i32, %arg1: memref<1x32x256xf32, #tpu.memory_space<vmem>>, %arg2: memref<32x2xf32, #tpu.memory_space<vmem>>, %arg3: memref<1x2xf32, #tpu.memory_space<vmem>>, %arg4: memref<2x32xf32, #tpu.memory_space<vmem>>, %arg5: memref<1x32xf32, #tpu.memory_space<vmem>>, %arg6: memref<32x1xf32, #tpu.memory_space<vmem>>, %arg7: memref<1x1xf32, #tpu.memory_space<vmem>>, %arg8: memref<1x32x256xf32, #tpu.memory_space<vmem>>) attributes {dimension_semantics = [#tpu.dimension_semantics<parallel>], iteration_bounds = array<i64: 2>, scalar_prefetch = 0 : i64, scratch_operands = 0 : i64, tpu.core_type = #tpu.core_type<tc>, window_params = [{transform_indices = @transform_0, window_bounds = array<i64: 1, 32, 256>}, {pipeline_mode = #tpu.pipeline_mode<synchronous>, transform_indices = @transform_1, window_bounds = array<i64: 32, 2>}, {pipeline_mode = #tpu.pipeline_mode<synchronous>, transform_indices = @transform_2, window_bounds = array<i64: 1, 2>}, {pipeline_mode = #tpu.pipeline_mode<synchronous>, transform_indices = @transform_3, window_bounds = array<i64: 2, 32>}, {pipeline_mode = #tpu.pipeline_mode<synchronous>, transform_indices = @transform_4, window_bounds = array<i64: 1, 32>}, {pipeline_mode = #tpu.pipeline_mode<synchronous>, transform_indices = @transform_5, window_bounds = array<i64: 32, 1>}, {pipeline_mode = #tpu.pipeline_mode<synchronous>, transform_indices = @transform_6, window_bounds = array<i64: 1, 1>}, {transform_indices = @transform_7, window_bounds = array<i64: 1, 32, 256>}]} {
    %c0 = arith.constant 0 : index
    %c0_0 = arith.constant 0 : index
    %c0_1 = arith.constant 0 : index
    %0 = vector.load %arg1[%c0, %c0_0, %c0_1] : memref<1x32x256xf32, #tpu.memory_space<vmem>>, vector<1x32x256xf32>
    %cst = arith.constant dense<0.000000e+00> : vector<1x32xf32>
    %1 = vector.multi_reduction <add>, %0, %cst [2] : vector<1x32x256xf32> to vector<1x32xf32>
    %cst_2 = arith.constant 3.906250e-03 : f32
    %2 = vector.broadcast %cst_2 : f32 to vector<1x32xf32>
    %3 = arith.mulf %1, %2 : vector<1x32xf32>
    %c0_3 = arith.constant 0 : index
    %c0_4 = arith.constant 0 : index
    %4 = vector.load %arg2[%c0_3, %c0_4] : memref<32x2xf32, #tpu.memory_space<vmem>>, vector<32x2xf32>
    %cst_5 = arith.constant dense<0.000000e+00> : vector<1x2xf32>
    %5 = tpu.matmul %3, %4, %cst_5 {dimension_numbers = #tpu.dot_dimension_numbers<[1], [0], [0], [1], [0, 0, 1, 1], [], []>} : vector<1x32xf32>, vector<32x2xf32>, vector<1x2xf32> -> vector<1x2xf32>
    %c0_6 = arith.constant 0 : index
    %c0_7 = arith.constant 0 : index
    %6 = vector.load %arg3[%c0_6, %c0_7] : memref<1x2xf32, #tpu.memory_space<vmem>>, vector<1x2xf32>
    %7 = arith.addf %5, %6 : vector<1x2xf32>
    %cst_8 = arith.constant 0.000000e+00 : f32
    %8 = vector.broadcast %cst_8 : f32 to vector<1x2xf32>
    %9 = arith.maximumf %7, %8 : vector<1x2xf32>
    %c0_9 = arith.constant 0 : index
    %c0_10 = arith.constant 0 : index
    %10 = vector.load %arg4[%c0_9, %c0_10] : memref<2x32xf32, #tpu.memory_space<vmem>>, vector<2x32xf32>
    %cst_11 = arith.constant dense<0.000000e+00> : vector<1x32xf32>
    %11 = tpu.matmul %9, %10, %cst_11 {dimension_numbers = #tpu.dot_dimension_numbers<[1], [0], [0], [1], [0, 0, 1, 1], [], []>} : vector<1x2xf32>, vector<2x32xf32>, vector<1x32xf32> -> vector<1x32xf32>
    %c0_12 = arith.constant 0 : index
    %c0_13 = arith.constant 0 : index
    %12 = vector.load %arg5[%c0_12, %c0_13] : memref<1x32xf32, #tpu.memory_space<vmem>>, vector<1x32xf32>
    %13 = arith.addf %11, %12 : vector<1x32xf32>
    %14 = arith.negf %13 : vector<1x32xf32>
    %15 = math.exp %14 : vector<1x32xf32>
    %cst_14 = arith.constant 1.000000e+00 : f32
    %16 = vector.broadcast %cst_14 : f32 to vector<1x32xf32>
    %17 = arith.addf %16, %15 : vector<1x32xf32>
    %18 = arith.divf %16, %17 : vector<1x32xf32>
    %c0_15 = arith.constant 0 : index
    %c0_16 = arith.constant 0 : index
    %19 = vector.load %arg6[%c0_15, %c0_16] : memref<32x1xf32, #tpu.memory_space<vmem>>, vector<32x1xf32>
    %20 = vector.shape_cast %19 : vector<32x1xf32> to vector<1x32x1xf32>
    %21 = vector.broadcast %20 : vector<1x32x1xf32> to vector<1x32x256xf32>
    %22 = arith.mulf %0, %21 : vector<1x32x256xf32>
    %cst_17 = arith.constant dense<0.000000e+00> : vector<1x256xf32>
    %23 = vector.multi_reduction <add>, %22, %cst_17 [1] : vector<1x32x256xf32> to vector<1x256xf32>
    %24 = vector.shape_cast %23 : vector<1x256xf32> to vector<1x1x256xf32>
    %c0_18 = arith.constant 0 : index
    %c0_19 = arith.constant 0 : index
    %25 = vector.load %arg7[%c0_18, %c0_19] : memref<1x1xf32, #tpu.memory_space<vmem>>, vector<1x1xf32>
    %26 = vector.shape_cast %25 : vector<1x1xf32> to vector<1x1x1xf32>
    %27 = vector.broadcast %26 : vector<1x1x1xf32> to vector<1x1x256xf32>
    %28 = arith.addf %24, %27 : vector<1x1x256xf32>
    %29 = arith.negf %28 : vector<1x1x256xf32>
    %30 = math.exp %29 : vector<1x1x256xf32>
    %cst_20 = arith.constant 1.000000e+00 : f32
    %31 = vector.broadcast %cst_20 : f32 to vector<1x1x256xf32>
    %32 = arith.addf %31, %30 : vector<1x1x256xf32>
    %33 = arith.divf %31, %32 : vector<1x1x256xf32>
    %34 = vector.shape_cast %18 : vector<1x32xf32> to vector<1x32x1xf32>
    %35 = vector.broadcast %34 : vector<1x32x1xf32> to vector<1x32x256xf32>
    %36 = vector.broadcast %33 : vector<1x1x256xf32> to vector<1x32x256xf32>
    %37 = arith.addf %35, %36 : vector<1x32x256xf32>
    %38 = arith.mulf %0, %37 : vector<1x32x256xf32>
    %c0_21 = arith.constant 0 : index
    %c0_22 = arith.constant 0 : index
    %c0_23 = arith.constant 0 : index
    %39 = vector.load %arg8[%c0_21, %c0_22, %c0_23] : memref<1x32x256xf32, #tpu.memory_space<vmem>>, vector<1x32x256xf32>
    tpu.vector_store %arg8[%c0_21, %c0_22, %c0_23], %38 {strides = array<i32>} : memref<1x32x256xf32, #tpu.memory_space<vmem>>, vector<1x32x256xf32>,
    return
  }
  func.func @transform_0(%arg0: i32) -> (i32, i32, i32) {
    %c0_i32 = arith.constant 0 : i32
    %c0_i32_0 = arith.constant 0 : i32
    %c0_i32_1 = arith.constant 0 : i32
    return %arg0, %c0_i32, %c0_i32_0 : i32, i32, i32
  }
  func.func @transform_1(%arg0: i32) -> (i32, i32) {
    %c0_i32 = arith.constant 0 : i32
    %c0_i32_0 = arith.constant 0 : i32
    %c0_i32_1 = arith.constant 0 : i32
    return %c0_i32, %c0_i32_0 : i32, i32
  }
  func.func @transform_2(%arg0: i32) -> (i32, i32) {
    %c0_i32 = arith.constant 0 : i32
    %c0_i32_0 = arith.constant 0 : i32
    %c0_i32_1 = arith.constant 0 : i32
    return %c0_i32, %c0_i32_0 : i32, i32
  }
  func.func @transform_3(%arg0: i32) -> (i32, i32) {
    %c0_i32 = arith.constant 0 : i32
    %c0_i32_0 = arith.constant 0 : i32
    %c0_i32_1 = arith.constant 0 : i32
    return %c0_i32, %c0_i32_0 : i32, i32
  }
  func.func @transform_4(%arg0: i32) -> (i32, i32) {
    %c0_i32 = arith.constant 0 : i32
    %c0_i32_0 = arith.constant 0 : i32
    %c0_i32_1 = arith.constant 0 : i32
    return %c0_i32, %c0_i32_0 : i32, i32
  }
  func.func @transform_5(%arg0: i32) -> (i32, i32) {
    %c0_i32 = arith.constant 0 : i32
    %c0_i32_0 = arith.constant 0 : i32
    %c0_i32_1 = arith.constant 0 : i32
    return %c0_i32, %c0_i32_0 : i32, i32
  }
  func.func @transform_6(%arg0: i32) -> (i32, i32) {
    %c0_i32 = arith.constant 0 : i32
    %c0_i32_0 = arith.constant 0 : i32
    %c0_i32_1 = arith.constant 0 : i32
    return %c0_i32, %c0_i32_0 : i32, i32
  }
  func.func @transform_7(%arg0: i32) -> (i32, i32, i32) {
    %c0_i32 = arith.constant 0 : i32
    %c0_i32_0 = arith.constant 0 : i32
    %c0_i32_1 = arith.constant 0 : i32
    return %arg0, %c0_i32, %c0_i32_0 : i32, i32, i32
  }
}

</mosaic_0001>

<llo_original>
// kernel: scse_forward.1
$region0: #{scse_forward.1}
  #allocation0 [shape = 'u32[]', space=smem, size = 0x4, offset = 0x4, fixed_abs, tag = 'smem constant byte address 0x4 - core index']
  #allocation1 [shape = 'u32[144,128]{1,0:T(1,128)}', space=vmem, size = 0x12000, scoped, tag = 'internal scratch']
  #allocation2 [shape = 'f32[1,1]{1,0:T(1,128)S(1)}', space=vmem, size = 0x200, scoped, tag = 'scoped memory for scse_forward.1']
  %s0 = inlined_call_operand.vmem [shape: f32[2,32,256], index: 0, kind: input, shape index: {}]
  %s1 = inlined_call_operand.vmem [shape: f32[32,2], index: 1, kind: input, shape index: {}]
  %s2 = inlined_call_operand.vmem [shape: f32[1,2], index: 2, kind: input, shape index: {}]
  %s3 = inlined_call_operand.vmem [shape: f32[2,32], index: 3, kind: input, shape index: {}]
  %s4 = inlined_call_operand.vmem [shape: f32[1,32], index: 4, kind: input, shape index: {}]
  %s5 = inlined_call_operand.vmem [shape: f32[32,1], index: 5, kind: input, shape index: {}]
  %s6 = inlined_call_operand.<no memory space> [shape: f32[1,1], index: 6, kind: input, shape index: {}]
  %s7 = inlined_call_operand.vmem [shape: f32[2,32,256], index: 7, kind: output, shape index: {}]
  %s8 = sld [smem:[#allocation0]]
  $region61: #{scse_forward.1} parent=0
    _
  %s10 = ssub.s32 1, %s8
  %s11 = scalar_select 0, %s10, %s8
  %v12 = vstv %s6
  %13 = vst [vmem:[#allocation2] sm:$0x1] %v12
  loop: start=0, step=1, limit=4
  $region2: #{scse_forward.1} parent=0 // loop_pre_header
    _
  $region3: #{scse_forward.1} parent=0 // loop_header
    %s15 = sphi 0, %s19
    %p16 = scmp.ge.s32.totalorder %s15, 4
    %s25 = sphi 0, %s27
    %s28 = sphi 0, %s25
    %s29 = sphi 0, %s28
    %s45 = sphi 0, %s29
    %s49 = sphi 0, %s49
    %s51 = sphi 0, %s49
    %s52 = sphi 0, %s51
    %s66 = sphi 0, %s52
    %s70 = sphi 0, %s70
    %s72 = sphi 0, %s70
    %s73 = sphi 0, %s72
    %s87 = sphi 0, %s73
    %s91 = sphi 0, %s91
    %s93 = sphi 0, %s91
    %s94 = sphi 0, %s93
    %s108 = sphi 0, %s94
    %s112 = sphi 0, %s112
    %s114 = sphi 0, %s112
    %s115 = sphi 0, %s114
    %s129 = sphi 0, %s115
    %s133 = sphi 0, %s133
    %s135 = sphi 0, %s133
    %s136 = sphi 0, %s135
    %s150 = sphi 0, %s136
    %s154 = sphi 0, %s154
    %s156 = sphi 0, %s154
    %s157 = sphi 0, %s156
    %s171 = sphi 0, %s157
    %s177 = sphi 0, %s179
    %s180 = sphi 0, %s177
    %s181 = sphi 0, %s180
    %s197 = sphi 0, %s181
  $region4: #{scse_forward.1} parent=0 // loop_header_branch
    %18 = sbr.rel (%p16) target = $region8
  $region5: #{scse_forward.1} parent=0 // loop_body
    %s20 = ssub.s32 %s15, 1
    %s21 = ssub.s32 %s15, 2
    %s22 = sadd.s32 %s15, 1
    %s23 = ssub.s32 %s15, %s22
    %p24 = scmp.eq.s32.totalorder %s23, 0
    %s26 = sadd.s32 %s25, 1
    %s27 = scalar_select %p24, %s25, %s26
    %p30 = pneg %p24
    %p31 = scmp.eq.s32.totalorder %s15, 1
    %p32 = por %p30, %p31
    %p33 = scmp.ne.s32.totalorder %s25, %s28
    %p34 = scmp.eq.s32.totalorder %s15, 0
    %p35 = por %p33, %p34
    %p36 = scmp.ne.s32.totalorder %s25, %s28
    %p37 = scmp.eq.s32.totalorder %s20, 1
    %p38 = por %p36, %p37
    %p39 = scmp.ne.s32.totalorder %s28, %s29
    %p40 = scmp.eq.s32.totalorder %s20, 0
    %p41 = por %p39, %p40
    %p42 = scmp.ne.s32.totalorder %s28, %s29
    %p43 = scmp.eq.s32.totalorder %s21, 1
    %p44 = por %p42, %p43
    %p46 = scmp.ne.s32.totalorder %s29, %s45
    %p47 = scmp.eq.s32.totalorder %s21, 0
    %p48 = por %p46, %p47
    %s50 = sadd.s32 %s49, 1
    %p53 = scmp.eq.s32.totalorder %s15, 1
    %p54 = scmp.ne.s32.totalorder %s49, %s51
    %p55 = scmp.eq.s32.totalorder %s15, 0
    %p56 = por %p54, %p55
    %p57 = scmp.ne.s32.totalorder %s49, %s51
    %p58 = scmp.eq.s32.totalorder %s20, 1
    %p59 = por %p57, %p58
    %p60 = scmp.ne.s32.totalorder %s51, %s52
    %p61 = scmp.eq.s32.totalorder %s20, 0
    %p62 = por %p60, %p61
    %p63 = scmp.ne.s32.totalorder %s51, %s52
    %p64 = scmp.eq.s32.totalorder %s21, 1
    %p65 = por %p63, %p64
    %p67 = scmp.ne.s32.totalorder %s52, %s66
    %p68 = scmp.eq.s32.totalorder %s21, 0
    %p69 = por %p67, %p68
    %s71 = sadd.s32 %s70, 1
    %p74 = scmp.eq.s32.totalorder %s15, 1
    %p75 = scmp.ne.s32.totalorder %s70, %s72
    %p76 = scmp.eq.s32.totalorder %s15, 0
    %p77 = por %p75, %p76
    %p78 = scmp.ne.s32.totalorder %s70, %s72
    %p79 = scmp.eq.s32.totalorder %s20, 1
    %p80 = por %p78, %p79
    %p81 = scmp.ne.s32.totalorder %s72, %s73
    %p82 = scmp.eq.s32.totalorder %s20, 0
    %p83 = por %p81, %p82
    %p84 = scmp.ne.s32.totalorder %s72, %s73
    %p85 = scmp.eq.s32.totalorder %s21, 1
    %p86 = por %p84, %p85
    %p88 = scmp.ne.s32.totalorder %s73, %s87
    %p89 = scmp.eq.s32.totalorder %s21, 0
    %p90 = por %p88, %p89
    %s92 = sadd.s32 %s91, 1
    %p95 = scmp.eq.s32.totalorder %s15, 1
    %p96 = scmp.ne.s32.totalorder %s91, %s93
    %p97 = scmp.eq.s32.totalorder %s15, 0
    %p98 = por %p96, %p97
    %p99 = scmp.ne.s32.totalorder %s91, %s93
    %p100 = scmp.eq.s32.totalorder %s20, 1
    %p101 = por %p99, %p100
    %p102 = scmp.ne.s32.totalorder %s93, %s94
    %p103 = scmp.eq.s32.totalorder %s20, 0
    %p104 = por %p102, %p103
    %p105 = scmp.ne.s32.totalorder %s93, %s94
    %p106 = scmp.eq.s32.totalorder %s21, 1
    %p107 = por %p105, %p106
    %p109 = scmp.ne.s32.totalorder %s94, %s108
    %p110 = scmp.eq.s32.totalorder %s21, 0
    %p111 = por %p109, %p110
    %s113 = sadd.s32 %s112, 1
    %p116 = scmp.eq.s32.totalorder %s15, 1
    %p117 = scmp.ne.s32.totalorder %s112, %s114
    %p118 = scmp.eq.s32.totalorder %s15, 0
    %p119 = por %p117, %p118
    %p120 = scmp.ne.s32.totalorder %s112, %s114
    %p121 = scmp.eq.s32.totalorder %s20, 1
    %p122 = por %p120, %p121
    %p123 = scmp.ne.s32.totalorder %s114, %s115
    %p124 = scmp.eq.s32.totalorder %s20, 0
    %p125 = por %p123, %p124
    %p126 = scmp.ne.s32.totalorder %s114, %s115
    %p127 = scmp.eq.s32.totalorder %s21, 1
    %p128 = por %p126, %p127
    %p130 = scmp.ne.s32.totalorder %s115, %s129
    %p131 = scmp.eq.s32.totalorder %s21, 0
    %p132 = por %p130, %p131
    %s134 = sadd.s32 %s133, 1
    %p137 = scmp.eq.s32.totalorder %s15, 1
    %p138 = scmp.ne.s32.totalorder %s133, %s135
    %p139 = scmp.eq.s32.totalorder %s15, 0
    %p140 = por %p138, %p139
    %p141 = scmp.ne.s32.totalorder %s133, %s135
    %p142 = scmp.eq.s32.totalorder %s20, 1
    %p143 = por %p141, %p142
    %p144 = scmp.ne.s32.totalorder %s135, %s136
    %p145 = scmp.eq.s32.totalorder %s20, 0
    %p146 = por %p144, %p145
    %p147 = scmp.ne.s32.totalorder %s135, %s136
    %p148 = scmp.eq.s32.totalorder %s21, 1
    %p149 = por %p147, %p148
    %p151 = scmp.ne.s32.totalorder %s136, %s150
    %p152 = scmp.eq.s32.totalorder %s21, 0
    %p153 = por %p151, %p152
    %s155 = sadd.s32 %s154, 1
    %p158 = scmp.eq.s32.totalorder %s15, 1
    %p159 = scmp.ne.s32.totalorder %s154, %s156
    %p160 = scmp.eq.s32.totalorder %s15, 0
    %p161 = por %p159, %p160
    %p162 = scmp.ne.s32.totalorder %s154, %s156
    %p163 = scmp.eq.s32.totalorder %s20, 1
    %p164 = por %p162, %p163
    %p165 = scmp.ne.s32.totalorder %s156, %s157
    %p166 = scmp.eq.s32.totalorder %s20, 0
    %p167 = por %p165, %p166
    %p168 = scmp.ne.s32.totalorder %s156, %s157
    %p169 = scmp.eq.s32.totalorder %s21, 1
    %p170 = por %p168, %p169
    %p172 = scmp.ne.s32.totalorder %s157, %s171
    %p173 = scmp.eq.s32.totalorder %s21, 0
    %p174 = por %p172, %p173
    %s175 = ssub.s32 %s15, %s22
    %p176 = scmp.eq.s32.totalorder %s175, 0
    %s178 = sadd.s32 %s177, 1
    %s179 = scalar_select %p176, %s177, %s178
    %p182 = pneg %p176
    %p183 = scmp.eq.s32.totalorder %s15, 1
    %p184 = por %p182, %p183
    %p185 = scmp.ne.s32.totalorder %s177, %s180
    %p186 = scmp.eq.s32.totalorder %s15, 0
    %p187 = por %p185, %p186
    %p188 = scmp.ne.s32.totalorder %s177, %s180
    %p189 = scmp.eq.s32.totalorder %s20, 1
    %p190 = por %p188, %p189
    %p191 = scmp.ne.s32.totalorder %s180, %s181
    %p192 = scmp.eq.s32.totalorder %s20, 0
    %p193 = por %p191, %p192
    %p194 = scmp.ne.s32.totalorder %s180, %s181
    %p195 = scmp.eq.s32.totalorder %s21, 1
    %p196 = por %p194, %p195
    %p198 = scmp.ne.s32.totalorder %s181, %s197
    %p199 = scmp.eq.s32.totalorder %s21, 0
    %p200 = por %p198, %p199
    %p201 = scmp.le.s32.totalorder 1, %s15
    %p202 = scmp.lt.s32.totalorder %s15, 3
    %p203 = pnand %p201, %p202
    %p204 = pneg %p203
    // Predicated region
    $region9: #{scse_forward.1} parent=5 // pred_check
      _
    $region10: #{scse_forward.1} parent=5 // pred_check_branch
      %206 = sbr.rel (%p203) target = $region12
    $region11: #{scse_forward.1} parent=5 // pred_region
      %s207 = ssub.s32 %s15, 1
      // Predicated region
      $region13: #{scse_forward.1} parent=11 // pred_check
        %p208 = pneg %p62
      $region14: #{scse_forward.1} parent=11 // pred_check_branch
        %210 = sbr.rel (%p208) target = $region16
      $region15: #{scse_forward.1} parent=11 // pred_region
        _
      $region16: #{scse_forward.1} parent=11 // pred_fallthru
        _
      // Predicated region
      $region17: #{scse_forward.1} parent=11 // pred_check
        %p211 = pneg %p83
      $region18: #{scse_forward.1} parent=11 // pred_check_branch
        %213 = sbr.rel (%p211) target = $region20
      $region19: #{scse_forward.1} parent=11 // pred_region
        _
      $region20: #{scse_forward.1} parent=11 // pred_fallthru
        _
      // Predicated region
      $region21: #{scse_forward.1} parent=11 // pred_check
        %p214 = pneg %p104
      $region22: #{scse_forward.1} parent=11 // pred_check_branch
        %216 = sbr.rel (%p214) target = $region24
      $region23: #{scse_forward.1} parent=11 // pred_region
        _
      $region24: #{scse_forward.1} parent=11 // pred_fallthru
        _
      // Predicated region
      $region25: #{scse_forward.1} parent=11 // pred_check
        %p217 = pneg %p125
      $region26: #{scse_forward.1} parent=11 // pred_check_branch
        %219 = sbr.rel (%p217) target = $region28
      $region27: #{scse_forward.1} parent=11 // pred_region
        _
      $region28: #{scse_forward.1} parent=11 // pred_fallthru
        _
      // Predicated region
      $region29: #{scse_forward.1} parent=11 // pred_check
        %p220 = pneg %p146
      $region30: #{scse_forward.1} parent=11 // pred_check_branch
        %222 = sbr.rel (%p220) target = $region32
      $region31: #{scse_forward.1} parent=11 // pred_region
        _
      $region32: #{scse_forward.1} parent=11 // pred_fallthru
        _
      // Predicated region
      $region33: #{scse_forward.1} parent=11 // pred_check
        %p223 = pneg %p167
      $region34: #{scse_forward.1} parent=11 // pred_check_branch
        %225 = sbr.rel (%p223) target = $region36
      $region35: #{scse_forward.1} parent=11 // pred_region
        _
      $region36: #{scse_forward.1} parent=11 // pred_fallthru
        _
    $region12: #{scse_forward.1} parent=5 // pred_fallthru
      _
    %p226 = scmp.lt.s32.totalorder %s15, 2
    // Predicated region
    $region37: #{scse_forward.1} parent=5 // pred_check
      %p227 = pneg %p226
    $region38: #{scse_forward.1} parent=5 // pred_check_branch
      %229 = sbr.rel (%p227) target = $region40
    $region39: #{scse_forward.1} parent=5 // pred_region
      // Predicated region
      $region41: #{scse_forward.1} parent=39 // pred_check
        %p230 = pneg %p35
      $region42: #{scse_forward.1} parent=39 // pred_check_branch
        %232 = sbr.rel (%p230) target = $region44
      $region43: #{scse_forward.1} parent=39 // pred_region
        %p233 = scmp.lt.s32.totalorder %s15, 1
        %s234 = scalar_select %p233, %s15, 1
        %s235 = smul.addr %s234, 8
        %s236 = smul.addr %s235, 8
        %s237 = scalar_lea.vmem %s0, %s236
      $region44: #{scse_forward.1} parent=39 // pred_fallthru
        _
    $region40: #{scse_forward.1} parent=5 // pred_fallthru
      _
    %p238 = scmp.le.s32.totalorder 1, %s15
    %p239 = scmp.lt.s32.totalorder %s15, 3
    %p240 = pnand %p238, %p239
    %p241 = pneg %p240
    // Predicated region
    $region45: #{scse_forward.1} parent=5 // pred_check
      _
    $region46: #{scse_forward.1} parent=5 // pred_check_branch
      %243 = sbr.rel (%p240) target = $region48
    $region47: #{scse_forward.1} parent=5 // pred_region
      %s244 = ssub.s32 %s15, 1
      %p245 = scmp.lt.s32.totalorder %s20, 1
      %s246 = scalar_select %p245, %s20, 1
      %s247 = smul.addr %s246, 8
      %s248 = smul.addr %s247, 8
      %s249 = scalar_lea.vmem %s0, %s248
      %p250 = pneg %p41
      %p251 = pneg %p38
      %p252 = pneg %p62
      %p253 = pneg %p59
      %p254 = pneg %p83
      %p255 = pneg %p80
      %p256 = pneg %p104
      %p257 = pneg %p101
      %p258 = pneg %p125
      %p259 = pneg %p122
      %p260 = pneg %p146
      %p261 = pneg %p143
      %p262 = pneg %p167
      %p263 = pneg %p164
      %p264 = pneg %p193
      %p265 = pneg %p190
      %p266 = scmp.lt.s32.totalorder %s20, 1
      %s267 = scalar_select %p266, %s20, 1
      %s268 = smul.addr %s267, 8
      %s269 = smul.addr %s268, 8
      %s270 = scalar_lea.vmem %s7, %s269
      %p271 = scmp.lt.s32.totalorder %s20, 1
      %s272 = scalar_select %p271, %s20, 1
      %s273 = smul.addr %s272, 8
      %s274 = smul.addr %s273, 8
      %s275 = scalar_lea.vmem %s0, %s274
      %p276 = scmp.lt.s32.totalorder %s20, 1
      %s277 = scalar_select %p276, %s20, 1
      %s278 = smul.addr %s277, 8
      %s279 = smul.addr %s278, 8
      %s280 = scalar_lea.vmem %s7, %s279
      %v281 = vld [vmem:[%s275] sm:$0xff]
      %v282 = vld [vmem:[%s275 + $0x8] sm:$0xff]
      %v283 = vld [vmem:[%s275 + $0x10] sm:$0xff]
      %v284 = vld [vmem:[%s275 + $0x18] sm:$0xff]
      %v285 = vld [vmem:[%s275 + $0x20] sm:$0xff]
      %v286 = vld [vmem:[%s275 + $0x28] sm:$0xff]
      %v287 = vld [vmem:[%s275 + $0x30] sm:$0xff]
      %v288 = vld [vmem:[%s275 + $0x38] sm:$0xff]
      %v289 = vadd.f32 %v281, %v282
      %290 = vadd.xlane.f32.xlu0 %v289
      %v291 = vpop.xlane.xlu0 %290
      %v292 = vadd.f32 %v283, %v284
      %293 = vadd.xlane.f32.xlu0 %v292
      %v294 = vpop.xlane.xlu0 %293
      %v295 = vadd.f32 %v285, %v286
      %296 = vadd.xlane.f32.xlu0 %v295
      %v297 = vpop.xlane.xlu0 %296
      %v298 = vadd.f32 %v287, %v288
      %299 = vadd.xlane.f32.xlu0 %v298
      %v300 = vpop.xlane.xlu0 %299
      %v301 = vmul.f32 %v291, 0.00390625
      %v302 = vmul.f32 %v294, 0.00390625
      %v303 = vmul.f32 %v297, 0.00390625
      %v304 = vmul.f32 %v300, 0.00390625
      %v305 = vld [vmem:[%s1] sm:$0xff]
      %v306 = vld [vmem:[%s1 + $0x8] sm:$0xff]
      %v307 = vld [vmem:[%s1 + $0x10] sm:$0xff]
      %v308 = vld [vmem:[%s1 + $0x18] sm:$0xff]
      %v309 = vld [vmem:[%s2] sm:$0x1]
      %v314 = vlaneseq
      %v315 = vand.u32 %v314, 127
      %v316 = vlaneseq
      %v317 = vshrl.u32 %v316, 7
      %v318 = vsub.s32 %v315, %v317
      %v319 = vrot.slane %v301, %v318
      %v320 = vadd.s32 %v315, 4294967288
      %v321 = vlaneseq
      %v322 = vshrl.u32 %v321, 7
      %v323 = vsub.s32 %v320, %v322
      %v324 = vrot.slane %v302, %v323
      %vm325 = vcmask 130112
      %v326 = vsel %vm325, %v324, %v319
      %v327 = vadd.s32 %v315, 4294967280
      %v328 = vlaneseq
      %v329 = vshrl.u32 %v328, 7
      %v330 = vsub.s32 %v327, %v329
      %v331 = vrot.slane %v303, %v330
      %vm332 = vcmask 195712
      %v333 = vsel %vm332, %v331, %v326
      %v334 = vadd.s32 %v315, 4294967272
      %v335 = vlaneseq
      %v336 = vshrl.u32 %v335, 7
      %v337 = vsub.s32 %v334, %v336
      %v338 = vrot.slane %v304, %v337
      %vm339 = vcmask 261312
      %v340 = vsel %vm339, %v338, %v333
      %vm341 = vcmask 261120
      %v342 = vsel %vm341, %v340, 0
      %344 = vmatprep.subr.mxu0 0.0
      %345 = vmatpush1.msra.mxu0 0.0
      %346 = vmatprep.subr.mxu0 0.0
      %347 = vmatpush1.msra.mxu0 0.0
      %348 = vmatprep.subr.mxu0 0.0
      %349 = vmatpush1.msra.mxu0 0.0
      %350 = vmatprep.subr.mxu0 0.0
      %351 = vmatpush1.msra.mxu0 0.0
      %352 = vmatprep.subr.mxu0 0.0
      %353 = vmatpush1.msra.mxu0 0.0
      %354 = vmatprep.subr.mxu0 0.0
      %355 = vmatpush1.msra.mxu0 0.0
      %356 = vmatprep.subr.mxu0 0.0
      %357 = vmatpush1.msra.mxu0 0.0
      %358 = vmatprep.subr.mxu0 0.0
      %359 = vmatpush1.msra.mxu0 0.0
      %360 = vmatprep.subr.mxu0 0.0
      %361 = vmatpush1.msra.mxu0 0.0
      %362 = vmatprep.subr.mxu0 0.0
      %363 = vmatpush1.msra.mxu0 0.0
      %364 = vmatprep.subr.mxu0 0.0
      %365 = vmatpush1.msra.mxu0 0.0
      %366 = vmatprep.subr.mxu0 0.0
      %367 = vmatpush1.msra.mxu0 0.0
      %368 = vmatprep.subr.mxu0 0.0
      %369 = vmatpush1.msra.mxu0 %v308
      %370 = vmatprep.subr.mxu0 0.0
      %371 = vmatpush1.msra.mxu0 %v307
      %372 = vmatprep.subr.mxu0 0.0
      %373 = vmatpush1.msra.mxu0 %v306
      %374 = vmatprep.subr.mxu0 0.0
      %375 = vmatpush1.msra.mxu0 %v305
      %376 = vmatprep.subr.mxu0 0.0
      %377 = vmatpush2.msra.mxu0 0.0
      %378 = vmatprep.subr.mxu0 0.0
      %379 = vmatpush2.msra.mxu0 0.0
      %380 = vmatprep.subr.mxu0 0.0
      %381 = vmatpush2.msra.mxu0 0.0
      %382 = vmatprep.subr.mxu0 0.0
      %383 = vmatpush2.msra.mxu0 0.0
      %384 = vmatprep.subr.mxu0 0.0
      %385 = vmatpush2.msra.mxu0 0.0
      %386 = vmatprep.subr.mxu0 0.0
      %387 = vmatpush2.msra.mxu0 0.0
      %388 = vmatprep.subr.mxu0 0.0
      %389 = vmatpush2.msra.mxu0 0.0
      %390 = vmatprep.subr.mxu0 0.0
      %391 = vmatpush2.msra.mxu0 0.0
      %392 = vmatprep.subr.mxu0 0.0
      %393 = vmatpush2.msra.mxu0 0.0
      %394 = vmatprep.subr.mxu0 0.0
      %395 = vmatpush2.msra.mxu0 0.0
      %396 = vmatprep.subr.mxu0 0.0
      %397 = vmatpush2.msra.mxu0 0.0
      %398 = vmatprep.subr.mxu0 0.0
      %399 = vmatpush2.msra.mxu0 0.0
      %400 = vmatprep.subr.mxu0 0.0
      %401 = vmatpush2.msra.mxu0 0.0
      %402 = vmatprep.subr.mxu0 0.0
      %403 = vmatpush2.msra.mxu0 0.0
      %404 = vmatprep.subr.mxu0 0.0
      %405 = vmatpush2.msra.mxu0 0.0
      %406 = vmatprep.subr.mxu0 0.0
      %407 = vmatpush2.msra.mxu0 0.0
      %408 = vmatprep.mubr.f32.mxu0 0.0
      %409 = vmatmul.mubr.f32.gmra.mxu0 %v342
      %v410 = vpop.f32.mrf.mxu0
      %v411 = vadd.f32 %v309, %v410
      %v412 = vpop.f32.mrf.mxu0
      %413 = vdwg.mxu0
      %v414 = vmax.f32 %v411, 0.0
      %v415 = vld [vmem:[%s3] sm:$0x3]
      %v416 = vld [vmem:[%s4] sm:$0x1]
      %vm417 = vcmask 15360
      %v419 = vsel %vm417, %v414, 0
      %vm421 = vcmask 1041408
      %v423 = vsel %vm421, %v415, 0
      %425 = vmatprep.subr.mxu0 0.0
      %426 = vmatpush1.msra.mxu0 0.0
      %427 = vmatprep.subr.mxu0 0.0
      %428 = vmatpush1.msra.mxu0 0.0
      %429 = vmatprep.subr.mxu0 0.0
      %430 = vmatpush1.msra.mxu0 0.0
      %431 = vmatprep.subr.mxu0 0.0
      %432 = vmatpush1.msra.mxu0 0.0
      %433 = vmatprep.subr.mxu0 0.0
      %434 = vmatpush1.msra.mxu0 0.0
      %435 = vmatprep.subr.mxu0 0.0
      %436 = vmatpush1.msra.mxu0 0.0
      %437 = vmatprep.subr.mxu0 0.0
      %438 = vmatpush1.msra.mxu0 0.0
      %439 = vmatprep.subr.mxu0 0.0
      %440 = vmatpush1.msra.mxu0 0.0
      %441 = vmatprep.subr.mxu0 0.0
      %442 = vmatpush1.msra.mxu0 0.0
      %443 = vmatprep.subr.mxu0 0.0
      %444 = vmatpush1.msra.mxu0 0.0
      %445 = vmatprep.subr.mxu0 0.0
      %446 = vmatpush1.msra.mxu0 0.0
      %447 = vmatprep.subr.mxu0 0.0
      %448 = vmatpush1.msra.mxu0 0.0
      %449 = vmatprep.subr.mxu0 0.0
      %450 = vmatpush1.msra.mxu0 0.0
      %451 = vmatprep.subr.mxu0 0.0
      %452 = vmatpush1.msra.mxu0 0.0
      %453 = vmatprep.subr.mxu0 0.0
      %454 = vmatpush1.msra.mxu0 0.0
      %455 = vmatprep.subr.mxu0 0.0
      %456 = vmatpush1.msra.mxu0 %v423
      %457 = vmatprep.subr.mxu0 0.0
      %458 = vmatpush2.msra.mxu0 0.0
      %459 = vmatprep.subr.mxu0 0.0
      %460 = vmatpush2.msra.mxu0 0.0
      %461 = vmatprep.subr.mxu0 0.0
      %462 = vmatpush2.msra.mxu0 0.0
      %463 = vmatprep.subr.mxu0 0.0
      %464 = vmatpush2.msra.mxu0 0.0
      %465 = vmatprep.subr.mxu0 0.0
      %466 = vmatpush2.msra.mxu0 0.0
      %467 = vmatprep.subr.mxu0 0.0
      %468 = vmatpush2.msra.mxu0 0.0
      %469 = vmatprep.subr.mxu0 0.0
      %470 = vmatpush2.msra.mxu0 0.0
      %471 = vmatprep.subr.mxu0 0.0
      %472 = vmatpush2.msra.mxu0 0.0
      %473 = vmatprep.subr.mxu0 0.0
      %474 = vmatpush2.msra.mxu0 0.0
      %475 = vmatprep.subr.mxu0 0.0
      %476 = vmatpush2.msra.mxu0 0.0
      %477 = vmatprep.subr.mxu0 0.0
      %478 = vmatpush2.msra.mxu0 0.0
      %479 = vmatprep.subr.mxu0 0.0
      %480 = vmatpush2.msra.mxu0 0.0
      %481 = vmatprep.subr.mxu0 0.0
      %482 = vmatpush2.msra.mxu0 0.0
      %483 = vmatprep.subr.mxu0 0.0
      %484 = vmatpush2.msra.mxu0 0.0
      %485 = vmatprep.subr.mxu0 0.0
      %486 = vmatpush2.msra.mxu0 0.0
      %487 = vmatprep.subr.mxu0 0.0
      %488 = vmatpush2.msra.mxu0 0.0
      %489 = vmatprep.mubr.f32.mxu0 0.0
      %490 = vmatmul.mubr.f32.gmra.mxu0 %v419
      %v491 = vpop.f32.mrf.mxu0
      %v492 = vadd.f32 %v416, %v491
      %v493 = vpop.f32.mrf.mxu0
      %494 = vdwg.mxu0
      %v495 = vxor.u32 %v492, 2147483648
      %v496 = vmul.f32 %v495, 1.442695
      %v497 = vpow.pop %v496
      %v498 = vadd.f32 %v497, 1.0
      %v499 = vrcp.pop %v498
      %v500 = vmul.f32 1.0, %v499
      %v501 = vld [vmem:[%s5] sm:$0xff]
      %v502 = vld [vmem:[%s5 + $0x8] sm:$0xff]
      %v503 = vld [vmem:[%s5 + $0x10] sm:$0xff]
      %v504 = vld [vmem:[%s5 + $0x18] sm:$0xff]
      %506 = vset.pattern.permute.xlu0 0
      %507 = vperm.xlu0 %506, %v501
      %v508 = vpop.permute.xlu0 %507
      %511 = vset.pattern.permute.xlu0 0
      %512 = vperm.xlu0 %511, %v502
      %v513 = vpop.permute.xlu0 %512
      %516 = vset.pattern.permute.xlu0 0
      %517 = vperm.xlu0 %516, %v503
      %v518 = vpop.permute.xlu0 %517
      %521 = vset.pattern.permute.xlu0 0
      %522 = vperm.xlu0 %521, %v504
      %v523 = vpop.permute.xlu0 %522
      %v525 = vmul.f32 %v281, %v508
      %v526 = vmul.f32 %v282, %v508
      %v527 = vmul.f32 %v283, %v513
      %v528 = vmul.f32 %v284, %v513
      %v529 = vmul.f32 %v285, %v518
      %v530 = vmul.f32 %v286, %v518
      %v531 = vmul.f32 %v287, %v523
      %v532 = vmul.f32 %v288, %v523
      %v533 = vadd.f32 %v525, %v527
      %v534 = vadd.f32 %v533, %v529
      %v535 = vadd.f32 %v534, %v531
      %v536 = vrot.slane %v535, 4
      %v537 = vadd.f32 %v535, %v536
      %v538 = vrot.slane %v537, 2
      %v539 = vadd.f32 %v537, %v538
      %v540 = vrot.slane %v539, 1
      %v541 = vadd.f32 %v539, %v540
      %v542 = vadd.f32 %v526, %v528
      %v543 = vadd.f32 %v542, %v530
      %v544 = vadd.f32 %v543, %v532
      %v545 = vrot.slane %v544, 4
      %v546 = vadd.f32 %v544, %v545
      %v547 = vrot.slane %v546, 2
      %v548 = vadd.f32 %v546, %v547
      %v549 = vrot.slane %v548, 1
      %v550 = vadd.f32 %v548, %v549
      %v551 = vld [vmem:[#allocation2] sm:$0x1]
      %553 = vset.pattern.permute.xlu0 0
      %554 = vperm.xlu0 %553, %v551
      %v555 = vpop.permute.xlu0 %554
      %v557 = vlaneseq
      %v558 = vshrl.u32 %v557, 7
      %v559 = vsub.s32 0, %v558
      %v560 = vrot.slane %v555, %v559
      %v561 = vadd.f32 %v541, %v560
      %v562 = vadd.f32 %v550, %v560
      %v563 = vxor.u32 %v561, 2147483648
      %v564 = vxor.u32 %v562, 2147483648
      %v565 = vmul.f32 %v563, 1.442695
      %v566 = vpow.pop %v565
      %v567 = vmul.f32 %v564, 1.442695
      %v568 = vpow.pop %v567
      %v569 = vadd.f32 %v566, 1.0
      %v570 = vadd.f32 %v568, 1.0
      %v571 = vrcp.pop %v569
      %v572 = vmul.f32 1.0, %v571
      %v573 = vrcp.pop %v570
      %v574 = vmul.f32 1.0, %v573
      %v575 = vlaneseq
      %v576 = vshrl.u32 %v575, 7
      %v577 = vsub.s32 0, %v576
      %v578 = vrot.slane %v500, %v577
      %580 = vbcast.lane.b32.xlu0 %v578, 256
      %v581 = vpop.permute.xlu0 %580
      %s583 = sor.u32 256, 8
      %584 = vbcast.lane.b32.xlu0 %v578, %s583
      %v585 = vpop.permute.xlu0 %584
      %s587 = sor.u32 256, 16
      %588 = vbcast.lane.b32.xlu0 %v578, %s587
      %v589 = vpop.permute.xlu0 %588
      %s591 = sor.u32 256, 24
      %592 = vbcast.lane.b32.xlu0 %v578, %s591
      %v593 = vpop.permute.xlu0 %592
      %v594 = vadd.f32 %v581, %v572
      %v595 = vadd.f32 %v581, %v574
      %v596 = vadd.f32 %v585, %v572
      %v597 = vadd.f32 %v585, %v574
      %v598 = vadd.f32 %v589, %v572
      %v599 = vadd.f32 %v589, %v574
      %v600 = vadd.f32 %v593, %v572
      %v601 = vadd.f32 %v593, %v574
      %v602 = vmul.f32 %v281, %v594
      %v603 = vmul.f32 %v282, %v595
      %v604 = vmul.f32 %v283, %v596
      %v605 = vmul.f32 %v284, %v597
      %v606 = vmul.f32 %v285, %v598
      %v607 = vmul.f32 %v286, %v599
      %v608 = vmul.f32 %v287, %v600
      %v609 = vmul.f32 %v288, %v601
      %610 = vst [vmem:[%s280] sm:$0xff] %v602
      %611 = vst [vmem:[%s280 + $0x8] sm:$0xff] %v603
      %612 = vst [vmem:[%s280 + $0x10] sm:$0xff] %v604
      %613 = vst [vmem:[%s280 + $0x18] sm:$0xff] %v605
      %614 = vst [vmem:[%s280 + $0x20] sm:$0xff] %v606
      %615 = vst [vmem:[%s280 + $0x28] sm:$0xff] %v607
      %616 = vst [vmem:[%s280 + $0x30] sm:$0xff] %v608
      %617 = vst [vmem:[%s280 + $0x38] sm:$0xff] %v609
      %p618 = scmp.lt.s32.totalorder %s20, 1
      %s619 = scalar_select %p618, %s20, 1
      %s620 = smul.addr %s619, 8
      %s621 = smul.addr %s620, 8
      %s622 = scalar_lea.vmem %s7, %s621
      // Predicated region
      $region49: #{scse_forward.1} parent=47 // pred_check
        %p623 = pneg %p190
      $region50: #{scse_forward.1} parent=47 // pred_check_branch
        %625 = sbr.rel (%p623) target = $region52
      $region51: #{scse_forward.1} parent=47 // pred_region
        _
      $region52: #{scse_forward.1} parent=47 // pred_fallthru
        _
    $region48: #{scse_forward.1} parent=5 // pred_fallthru
      _
    %p626 = scmp.le.s32.totalorder 2, %s15
    // Predicated region
    $region53: #{scse_forward.1} parent=5 // pred_check
      %p627 = pneg %p626
    $region54: #{scse_forward.1} parent=5 // pred_check_branch
      %629 = sbr.rel (%p627) target = $region56
    $region55: #{scse_forward.1} parent=5 // pred_region
      %s630 = ssub.s32 %s15, 2
      // Predicated region
      $region57: #{scse_forward.1} parent=55 // pred_check
        %p631 = pneg %p196
      $region58: #{scse_forward.1} parent=55 // pred_check_branch
        %633 = sbr.rel (%p631) target = $region60
      $region59: #{scse_forward.1} parent=55 // pred_region
        %p634 = scmp.lt.s32.totalorder %s21, 1
        %s635 = scalar_select %p634, %s21, 1
        %s636 = smul.addr %s635, 8
        %s637 = smul.addr %s636, 8
        %s638 = scalar_lea.vmem %s7, %s637
      $region60: #{scse_forward.1} parent=55 // pred_fallthru
        _
    $region56: #{scse_forward.1} parent=5 // pred_fallthru
      _
  $region6: #{scse_forward.1} parent=0 // loop_footer
    %s19 = sadd.s32 1, %s15
  $region7: #{scse_forward.1} parent=0 // loop_footer_branch
    %14 = sbr.rel target = $region3
  $region8: #{scse_forward.1} parent=0 // loop_exit
    _

</llo_original>
